<compile_context>
chip_gen: v5e
topology: v5e:2x2
jax: 0.10.0
libtpu: 0.0.40
codegen_flags: <defaults>
</compile_context>

<pallas_src>
import jax
import jax.numpy as jnp
from jax import lax
from jax.experimental import pallas as pl
from jax.experimental.pallas import tpu as pltpu

EPS = 1e-8            # F.cosine_similarity default eps
EPS_SQ = EPS * EPS    # max(||x||, eps) == sqrt(max(||x||^2, eps^2))


def _make_scl_kernel(Ts, S, SPC, needs_mask):
    """Kernel for one (batch, chunk, seq-tile, head) grid point.

    anchor_ref, head_ref: (Ts, D) VMEM tiles.  o_ref: (1, 1, 8, 128) resident accumulator.
    """

    def kernel(anchor_ref, head_ref, o_ref):
        s = pl.program_id(2)
        h = pl.program_id(3)

        # Output block is resident across the (seq-tile, head) "arbitrary" axes:
        # zero it on the first step of each (batch, chunk).
        @pl.when(jnp.logical_and(s == 0, h == 0))
        def _():
            o_ref[...] = jnp.zeros_like(o_ref)

        anchor = anchor_ref[...].astype(jnp.float32)                 # (Ts, D)
        head = head_ref[...].astype(jnp.float32)                     # (Ts, D)

        asq = jnp.sum(anchor * anchor, axis=-1, keepdims=True)       # (Ts, 1)
        osq = jnp.sum(head * head, axis=-1, keepdims=True)           # (Ts, 1)
        dots = jnp.sum(head * anchor, axis=-1, keepdims=True)        # (Ts, 1)

        # rsqrt(max(||x||^2, eps^2)) == 1 / max(||x||, eps): EUP op, no sqrt + divide.
        cos = (dots
               * lax.rsqrt(jnp.maximum(asq, EPS_SQ))
               * lax.rsqrt(jnp.maximum(osq, EPS_SQ)))                # (Ts, 1)
        one_minus = 1.0 - cos

        if needs_mask:
            # Tail tile: rows at/after S hold clamped / stale data — mask them out.
            c = pl.program_id(1)
            row = lax.broadcasted_iota(jnp.int32, (Ts, 1), 0)
            start = (c * SPC + s) * Ts
            one_minus = jnp.where(row < (S - start), one_minus, 0.0)

        # Broadcast the scalar partial over the whole (8, 128) tile: lane-dense, unmasked
        # stores; the final mean / (B*(H-2)*S) scaling happens once in the wrapper.
        o_ref[...] += jnp.sum(one_minus)

    return kernel


def _vmem_budgets():
    """(per-step block budget bytes, vmem_limit_bytes), generation-aware.

    Conservative (v7x-safe) defaults if the hardware query is unavailable.
    """
    vmem_bytes = 64 << 20
    try:
        info = pltpu.get_tpu_info()
        vmem_bytes = int(getattr(info, "vmem_capacity_bytes", vmem_bytes))
    except Exception:
        pass
    if vmem_bytes <= (64 << 20):      # v7x-class: 64 MiB physical / 32 MiB scoped default
        return 10 << 20, 32 << 20
    return 20 << 20, 64 << 20         # v5e / v6e: 128 MiB physical VMEM


def _pick_seq_tile(S, D, itemsize, block_budget_bytes):
    """Largest packing-aligned Ts whose per-step working set fits the budget.

    Working set ≈ double-buffered anchor + head input blocks (2 * 2 * Ts*D*itemsize)
    plus ~4 f32 temporaries of shape (Ts, D) from the in-kernel upcast / products.
    """
    pack = max(8, 32 // itemsize)                     # 8 f32, 16 bf16, 32 int8/fp8
    row_bytes = D * (4 * itemsize + 4 * 4)
    ts = block_budget_bytes // max(1, row_bytes)
    ts = max(pack, (ts // pack) * pack)
    s_padded = -(-S // pack) * pack                   # round S up to the packing
    return min(ts, s_padded)


def scl_pallas(heads):
    """heads: (B, H, S, D) -> scalar float32 SCL loss (matches the PyTorch module)."""
    B, H, S, D = heads.shape
    if H <= 1:
        raise ValueError('There must be at least 2 heads to compute SCL.')
    if H == 2:
        # The reference excludes the last head, so H == 2 would average over zero heads
        # (the PyTorch loop divides by count == 0).
        raise ValueError('SCL needs at least 3 heads (the last head is excluded).')

    itemsize = jnp.dtype(heads.dtype).itemsize
    block_budget, vmem_limit = _vmem_budgets()
    Ts = _pick_seq_tile(S, D, itemsize, block_budget)
    num_s_tiles = pl.cdiv(S, Ts)
    needs_mask = (S % Ts) != 0

    # Split the seq-tile axis into 2 "parallel" chunks so both v7x TensorCores stay busy
    # even when B is 1 / odd; harmless (just a loop split) on single-TC v5e/v6e.
    NC = 2 if (num_s_tiles >= 2 and num_s_tiles % 2 == 0) else 1
    SPC = num_s_tiles // NC

    kernel = _make_scl_kernel(Ts, S, SPC, needs_mask)

    in_block = (pl.Squeezed(), pl.Squeezed(), Ts, D)
    partials = pl.pallas_call(
        kernel,
        out_shape=jax.ShapeDtypeStruct((B, NC, 8, 128), jnp.float32),
        grid_spec=pltpu.PrefetchScalarGridSpec(
            num_scalar_prefetch=0,
            grid=(B, NC, SPC, H - 2),
            in_specs=[
                # Anchor (head 0): block index constant across the innermost head axis, so
                # its DMA is skipped on head steps — the dead last head is never fetched.
                pl.BlockSpec(in_block, lambda b, c, s, h: (b, 0, c * SPC + s, 0)),
                # Head h+1 for h in [0, H-2): exactly the heads the reference uses.
                pl.BlockSpec(in_block, lambda b, c, s, h: (b, h + 1, c * SPC + s, 0)),
            ],
            out_specs=pl.BlockSpec((1, 1, 8, 128), lambda b, c, s, h: (b, c, 0, 0)),
        ),
        compiler_params=pltpu.CompilerParams(
            # batch/chunk axes shard across TensorCores; seq-tile and head axes accumulate
            # into the per-(batch, chunk) resident output block.
            dimension_semantics=("parallel", "parallel", "arbitrary", "arbitrary"),
            vmem_limit_bytes=vmem_limit,
        ),
    )(heads, heads)

    # Every lane of partials[b, c] holds sum_{h, s in chunk c} (1 - cos) for batch b.
    total = jnp.sum(partials[:, :, 0, 0])
    return total / jnp.float32(B * (H - 2) * S)


def scl_ref(heads):
    """Pure-JAX reference matching the PyTorch loops."""
    B, H, S, D = heads.shape
    anchor = heads[:, 0].astype(jnp.float32)               # (B, S, D)
    others = heads[:, 1:H - 1].astype(jnp.float32)         # (B, H-2, S, D)
    dots = jnp.sum(others * anchor[:, None], axis=-1)
    an = jnp.maximum(jnp.linalg.norm(anchor, axis=-1), EPS)     # (B, S)
    on = jnp.maximum(jnp.linalg.norm(others, axis=-1), EPS)     # (B, H-2, S)
    cos = dots / (an[:, None, :] * on)
    return jnp.mean(1.0 - cos)


if __name__ == "__main__":
    key = jax.random.PRNGKey(0)
    B, H, S, D = 2, 4, 8, 32     # batch=2, num_heads=4, seq=8, d_model=32
    heads = jax.random.normal(key, (B, H, S, D), dtype=jnp.float32)

    loss = jax.block_until_ready(scl_pallas(heads))
    ref = jax.block_until_ready(scl_ref(heads))

    assert jnp.allclose(loss, ref, rtol=1e-5, atol=1e-5), (loss, ref)
    print("KERNEL_OK")
</pallas_src>

<mosaic_0001>
module attributes {stable_mosaic.version = 11 : i64} {
  func.func @kernel(%arg0: i32, %arg1: i32, %arg2: i32, %arg3: i32, %arg4: memref<1x1x8x32xf32, #tpu.memory_space<vmem>>, %arg5: memref<1x1x8x32xf32, #tpu.memory_space<vmem>>, %arg6: memref<1x1x8x128xf32, #tpu.memory_space<vmem>>) attributes {dimension_semantics = [#tpu.dimension_semantics<parallel>, #tpu.dimension_semantics<parallel>, #tpu.dimension_semantics<arbitrary>, #tpu.dimension_semantics<arbitrary>], iteration_bounds = array<i64: 2, 1, 1, 2>, scalar_prefetch = 0 : i64, scratch_operands = 0 : i64, tpu.core_type = #tpu.core_type<tc>, window_params = [{transform_indices = @transform_0, window_bounds = array<i64: 1, 1, 8, 32>}, {transform_indices = @transform_1, window_bounds = array<i64: 1, 1, 8, 32>}, {transform_indices = @transform_2, window_bounds = array<i64: 1, 1, 8, 128>}]} {
    %c0_i32 = arith.constant 0 : i32
    %0 = arith.cmpi eq, %arg2, %c0_i32 : i32
    %c0_i32_0 = arith.constant 0 : i32
    %1 = arith.cmpi eq, %arg3, %c0_i32_0 : i32
    %2 = arith.andi %0, %1 : i1
    %3 = arith.extui %2 : i1 to i32
    %c0_i32_1 = arith.constant 0 : i32
    %4 = arith.cmpi ne, %3, %c0_i32_1 : i32
    scf.if %4 {
      %cst_23 = arith.constant 0.000000e+00 : f32
      %36 = vector.broadcast %cst_23 : f32 to vector<1x1x8x128xf32>
      %c0_24 = arith.constant 0 : index
      %c0_25 = arith.constant 0 : index
      %c0_26 = arith.constant 0 : index
      %c0_27 = arith.constant 0 : index
      %37 = vector.load %arg6[%c0_24, %c0_25, %c0_26, %c0_27] : memref<1x1x8x128xf32, #tpu.memory_space<vmem>>, vector<1x1x8x128xf32>
      tpu.vector_store %arg6[%c0_24, %c0_25, %c0_26, %c0_27], %36 {strides = array<i32>} : memref<1x1x8x128xf32, #tpu.memory_space<vmem>>, vector<1x1x8x128xf32>,
    } else {
    }
    %c0 = arith.constant 0 : index
    %c0_2 = arith.constant 0 : index
    %c0_3 = arith.constant 0 : index
    %c0_4 = arith.constant 0 : index
    %5 = vector.load %arg4[%c0, %c0_2, %c0_3, %c0_4] : memref<1x1x8x32xf32, #tpu.memory_space<vmem>>, vector<1x1x8x32xf32>
    %6 = vector.shape_cast %5 : vector<1x1x8x32xf32> to vector<8x32xf32>
    %c0_5 = arith.constant 0 : index
    %c0_6 = arith.constant 0 : index
    %c0_7 = arith.constant 0 : index
    %c0_8 = arith.constant 0 : index
    %7 = vector.load %arg5[%c0_5, %c0_6, %c0_7, %c0_8] : memref<1x1x8x32xf32, #tpu.memory_space<vmem>>, vector<1x1x8x32xf32>
    %8 = vector.shape_cast %7 : vector<1x1x8x32xf32> to vector<8x32xf32>
    %9 = arith.mulf %6, %6 : vector<8x32xf32>
    %cst = arith.constant dense<0.000000e+00> : vector<8xf32>
    %10 = vector.multi_reduction <add>, %9, %cst [1] : vector<8x32xf32> to vector<8xf32>
    %11 = vector.shape_cast %10 : vector<8xf32> to vector<8x1xf32>
    %12 = arith.mulf %8, %8 : vector<8x32xf32>
    %cst_9 = arith.constant dense<0.000000e+00> : vector<8xf32>
    %13 = vector.multi_reduction <add>, %12, %cst_9 [1] : vector<8x32xf32> to vector<8xf32>
    %14 = vector.shape_cast %13 : vector<8xf32> to vector<8x1xf32>
    %15 = arith.mulf %8, %6 : vector<8x32xf32>
    %cst_10 = arith.constant dense<0.000000e+00> : vector<8xf32>
    %16 = vector.multi_reduction <add>, %15, %cst_10 [1] : vector<8x32xf32> to vector<8xf32>
    %17 = vector.shape_cast %16 : vector<8xf32> to vector<8x1xf32>
    %cst_11 = arith.constant 1.000000e-16 : f32
    %18 = vector.broadcast %cst_11 : f32 to vector<8x1xf32>
    %19 = arith.maximumf %11, %18 : vector<8x1xf32>
    %20 = math.rsqrt %19 : vector<8x1xf32>
    %21 = arith.mulf %17, %20 : vector<8x1xf32>
    %cst_12 = arith.constant 1.000000e-16 : f32
    %22 = vector.broadcast %cst_12 : f32 to vector<8x1xf32>
    %23 = arith.maximumf %14, %22 : vector<8x1xf32>
    %24 = math.rsqrt %23 : vector<8x1xf32>
    %25 = arith.mulf %21, %24 : vector<8x1xf32>
    %cst_13 = arith.constant 1.000000e+00 : f32
    %26 = vector.broadcast %cst_13 : f32 to vector<8x1xf32>
    %27 = arith.subf %26, %25 : vector<8x1xf32>
    %c0_14 = arith.constant 0 : index
    %c0_15 = arith.constant 0 : index
    %c0_16 = arith.constant 0 : index
    %c0_17 = arith.constant 0 : index
    %28 = vector.load %arg6[%c0_14, %c0_15, %c0_16, %c0_17] : memref<1x1x8x128xf32, #tpu.memory_space<vmem>>, vector<1x1x8x128xf32>
    %29 = vector.shape_cast %27 : vector<8x1xf32> to vector<1x8x1xf32>
    %cst_18 = arith.constant dense<0.000000e+00> : vector<1xf32>
    %30 = vector.multi_reduction <add>, %29, %cst_18 [1, 2] : vector<1x8x1xf32> to vector<1xf32>
    %31 = vector.shape_cast %30 : vector<1xf32> to vector<1x1x1xf32>
    %32 = vector.extract %31[0, 0, 0] : f32 from vector<1x1x1xf32>
    %33 = vector.broadcast %32 : f32 to vector<1x1x8x128xf32>
    %34 = arith.addf %28, %33 : vector<1x1x8x128xf32>
    %c0_19 = arith.constant 0 : index
    %c0_20 = arith.constant 0 : index
    %c0_21 = arith.constant 0 : index
    %c0_22 = arith.constant 0 : index
    %35 = vector.load %arg6[%c0_19, %c0_20, %c0_21, %c0_22] : memref<1x1x8x128xf32, #tpu.memory_space<vmem>>, vector<1x1x8x128xf32>
    tpu.vector_store %arg6[%c0_19, %c0_20, %c0_21, %c0_22], %34 {strides = array<i32>} : memref<1x1x8x128xf32, #tpu.memory_space<vmem>>, vector<1x1x8x128xf32>,
    return
  }
  func.func @transform_0(%arg0: i32, %arg1: i32, %arg2: i32, %arg3: i32) -> (i32, i32, i32, i32) {
    %c1_i32 = arith.constant 1 : i32
    %0 = arith.muli %arg1, %c1_i32 : i32
    %1 = arith.addi %0, %arg2 : i32
    %c0_i32 = arith.constant 0 : i32
    %c0_i32_0 = arith.constant 0 : i32
    %c0_i32_1 = arith.constant 0 : i32
    return %arg0, %c0_i32, %1, %c0_i32_0 : i32, i32, i32, i32
  }
  func.func @transform_1(%arg0: i32, %arg1: i32, %arg2: i32, %arg3: i32) -> (i32, i32, i32, i32) {
    %c1_i32 = arith.constant 1 : i32
    %0 = arith.addi %arg3, %c1_i32 : i32
    %c1_i32_0 = arith.constant 1 : i32
    %1 = arith.muli %arg1, %c1_i32_0 : i32
    %2 = arith.addi %1, %arg2 : i32
    %c0_i32 = arith.constant 0 : i32
    %c0_i32_1 = arith.constant 0 : i32
    return %arg0, %0, %2, %c0_i32 : i32, i32, i32, i32
  }
  func.func @transform_2(%arg0: i32, %arg1: i32, %arg2: i32, %arg3: i32) -> (i32, i32, i32, i32) {
    %c0_i32 = arith.constant 0 : i32
    %c0_i32_0 = arith.constant 0 : i32
    %c0_i32_1 = arith.constant 0 : i32
    return %arg0, %arg1, %c0_i32, %c0_i32_0 : i32, i32, i32, i32
  }
}

</mosaic_0001>

<llo_original>
// kernel: tpu_custom_call.1
$region0: #{tpu_custom_call.1}
  #allocation0 [shape = 'u32[]', space=smem, size = 0x4, offset = 0x4, fixed_abs, tag = 'smem constant byte address 0x4 - core index']
  #allocation1 [shape = 'u32[72,128]{1,0:T(1,128)}', space=vmem, size = 0x9000, scoped, tag = 'internal scratch']
  %s0 = inlined_call_operand.hbm [shape: f32[2,4,8,32], index: 0, kind: input, shape index: {}]
  %s1 = inlined_call_operand.hbm [shape: f32[2,4,8,32], index: 1, kind: input, shape index: {}]
  %s2 = inlined_call_operand.hbm [shape: f32[2,1,8,128], index: 2, kind: output, shape index: {}]
  %s3 = sld [smem:[#allocation0]]
  $region53: #{tpu_custom_call.1} parent=0
    _
  %s5 = ssub.s32 1, %s3
  %s6 = scalar_select 0, %s5, %s3
  $region1: #{tpu_custom_call.1} parent=0
    #allocation2 [shape = 'u8[8192]{0}', space=vmem, size = 0x2000, scoped, tag = 'input window, operand 0']
    #allocation3 [shape = 's32[2]{0}', space=sflag, size = 0x8, scoped, tag = 'scoped memory for tpu_custom_call.1']
    #allocation4 [shape = 's32[2]{0}', space=sflag, size = 0x8, scoped, tag = 'scoped memory for tpu_custom_call.1']
    #allocation5 [shape = 'u8[8192]{0}', space=vmem, size = 0x2000, scoped, tag = 'input window, operand 1']
    #allocation6 [shape = 's32[2]{0}', space=sflag, size = 0x8, scoped, tag = 'scoped memory for tpu_custom_call.1']
    #allocation7 [shape = 'u8[8192]{0}', space=vmem, size = 0x2000, scoped, tag = 'output window, operand 0']
    %7 = vsyncpa [#allocation3], 0
    %s8 = scalar_lea.sflag [#allocation3], 1
    %9 = vsyncpa %s8, 0
    %10 = vsyncpa [#allocation6], 0
    %s11 = scalar_lea.sflag [#allocation6], 1
    %12 = vsyncpa %s11, 0
    %13 = vsyncpa [#allocation4], 0
    %s14 = scalar_lea.sflag [#allocation4], 1
    %15 = vsyncpa %s14, 0
    loop: start=0, step=1, limit=6
    $region2: #{tpu_custom_call.1} parent=1 // loop_pre_header
      _
    $region3: #{tpu_custom_call.1} parent=1 // loop_header
      %s17 = sphi 0, %s21
      %p18 = scmp.ge.s32.totalorder %s17, 6
      %s24 = sphi 0, %s50
      %s25 = sphi 0, %s46
      %s26 = sphi 0, %s42
      %s27 = sphi 0, %s38
      %s28 = sphi 0, %s24
      %s29 = sphi 0, %s25
      %s30 = sphi 0, %s26
      %s31 = sphi 0, %s27
      %s32 = sphi 0, %s28
      %s33 = sphi 0, %s29
      %s34 = sphi 0, %s30
      %s35 = sphi 0, %s31
      %s57 = sphi 0, %s59
      %s60 = sphi 0, %s57
      %s61 = sphi 0, %s60
      %s77 = sphi 0, %s61
      %s91 = sphi 0, %s93
      %s94 = sphi 0, %s91
      %s95 = sphi 0, %s94
      %s111 = sphi 0, %s95
      %s119 = sphi 0, %s121
      %s122 = sphi 0, %s119
      %s123 = sphi 0, %s122
      %s139 = sphi 0, %s123
    $region4: #{tpu_custom_call.1} parent=1 // loop_header_branch
      %20 = sbr.rel (%p18) target = $region8
    $region5: #{tpu_custom_call.1} parent=1 // loop_body
      %s22 = ssub.s32 %s17, 1
      %s23 = ssub.s32 %s17, 2
      %s36 = sadd.s32 1, %s27
      %p37 = scmp.ge.s32.totalorder %s36, 2
      %s38 = scalar_select %p37, 0, %s36
      %s39 = sadd.s32 1, %s26
      %s40 = scalar_select %p37, %s39, %s26
      %p41 = scmp.ge.s32.totalorder %s40, 1
      %s42 = scalar_select %p41, 0, %s40
      %s43 = sadd.s32 1, %s25
      %s44 = scalar_select %p41, %s43, %s25
      %p45 = scmp.ge.s32.totalorder %s44, 1
      %s46 = scalar_select %p45, 0, %s44
      %s47 = sadd.s32 1, %s24
      %s48 = scalar_select %p45, %s47, %s24
      %p49 = scmp.ge.s32.totalorder %s48, 2
      %s50 = scalar_select %p49, 0, %s48
      %s51 = sadd.s32 %s25, %s26
      %s52 = sadd.s32 %s46, %s42
      %s53 = ssub.s32 %s24, %s50
      %s54 = ssub.s32 %s51, %s52
      %s55 = sor.u32 %s53, %s54
      %p56 = scmp.eq.s32.totalorder %s55, 0
      %s58 = sadd.s32 %s57, 1
      %s59 = scalar_select %p56, %s57, %s58
      %p62 = pneg %p56
      %p63 = scmp.eq.s32.totalorder %s17, 3
      %p64 = por %p62, %p63
      %p65 = scmp.ne.s32.totalorder %s57, %s60
      %p66 = scmp.eq.s32.totalorder %s17, 0
      %p67 = por %p65, %p66
      %p68 = scmp.ne.s32.totalorder %s57, %s60
      %p69 = scmp.eq.s32.totalorder %s22, 3
      %p70 = por %p68, %p69
      %p71 = scmp.ne.s32.totalorder %s60, %s61
      %p72 = scmp.eq.s32.totalorder %s22, 0
      %p73 = por %p71, %p72
      %p74 = scmp.ne.s32.totalorder %s60, %s61
      %p75 = scmp.eq.s32.totalorder %s23, 3
      %p76 = por %p74, %p75
      %p78 = scmp.ne.s32.totalorder %s61, %s77
      %p79 = scmp.eq.s32.totalorder %s23, 0
      %p80 = por %p78, %p79
      %s81 = sadd.s32 %s27, 1
      %s82 = sadd.s32 %s25, %s26
      %s83 = sadd.s32 %s38, 1
      %s84 = sadd.s32 %s46, %s42
      %s85 = ssub.s32 %s24, %s50
      %s86 = ssub.s32 %s81, %s83
      %s87 = sor.u32 %s85, %s86
      %s88 = ssub.s32 %s82, %s84
      %s89 = sor.u32 %s87, %s88
      %p90 = scmp.eq.s32.totalorder %s89, 0
      %s92 = sadd.s32 %s91, 1
      %s93 = scalar_select %p90, %s91, %s92
      %p96 = pneg %p90
      %p97 = scmp.eq.s32.totalorder %s17, 3
      %p98 = por %p96, %p97
      %p99 = scmp.ne.s32.totalorder %s91, %s94
      %p100 = scmp.eq.s32.totalorder %s17, 0
      %p101 = por %p99, %p100
      %p102 = scmp.ne.s32.totalorder %s91, %s94
      %p103 = scmp.eq.s32.totalorder %s22, 3
      %p104 = por %p102, %p103
      %p105 = scmp.ne.s32.totalorder %s94, %s95
      %p106 = scmp.eq.s32.totalorder %s22, 0
      %p107 = por %p105, %p106
      %p108 = scmp.ne.s32.totalorder %s94, %s95
      %p109 = scmp.eq.s32.totalorder %s23, 3
      %p110 = por %p108, %p109
      %p112 = scmp.ne.s32.totalorder %s95, %s111
      %p113 = scmp.eq.s32.totalorder %s23, 0
      %p114 = por %p112, %p113
      %s115 = ssub.s32 %s24, %s50
      %s116 = ssub.s32 %s25, %s46
      %s117 = sor.u32 %s115, %s116
      %p118 = scmp.eq.s32.totalorder %s117, 0
      %s120 = sadd.s32 %s119, 1
      %s121 = scalar_select %p118, %s119, %s120
      %p124 = pneg %p118
      %p125 = scmp.eq.s32.totalorder %s17, 3
      %p126 = por %p124, %p125
      %p127 = scmp.ne.s32.totalorder %s119, %s122
      %p128 = scmp.eq.s32.totalorder %s17, 0
      %p129 = por %p127, %p128
      %p130 = scmp.ne.s32.totalorder %s119, %s122
      %p131 = scmp.eq.s32.totalorder %s22, 3
      %p132 = por %p130, %p131
      %p133 = scmp.ne.s32.totalorder %s122, %s123
      %p134 = scmp.eq.s32.totalorder %s22, 0
      %p135 = por %p133, %p134
      %p136 = scmp.ne.s32.totalorder %s122, %s123
      %p137 = scmp.eq.s32.totalorder %s23, 3
      %p138 = por %p136, %p137
      %p140 = scmp.ne.s32.totalorder %s123, %s139
      %p141 = scmp.eq.s32.totalorder %s23, 0
      %p142 = por %p140, %p141
      %p143 = scmp.le.s32.totalorder 1, %s17
      %p144 = scmp.lt.s32.totalorder %s17, 5
      %p145 = pnand %p143, %p144
      %p146 = pneg %p145
      // Predicated region
      $region9: #{tpu_custom_call.1} parent=5 // pred_check
        _
      $region10: #{tpu_custom_call.1} parent=5 // pred_check_branch
        %148 = sbr.rel (%p145) target = $region12
      $region11: #{tpu_custom_call.1} parent=5 // pred_region
        %s149 = ssub.s32 %s17, 1
      $region12: #{tpu_custom_call.1} parent=5 // pred_fallthru
        _
      %p150 = scmp.lt.s32.totalorder %s17, 4
      // Predicated region
      $region13: #{tpu_custom_call.1} parent=5 // pred_check
        %p151 = pneg %p150
      $region14: #{tpu_custom_call.1} parent=5 // pred_check_branch
        %153 = sbr.rel (%p151) target = $region16
      $region15: #{tpu_custom_call.1} parent=5 // pred_region
        // Predicated region
        $region17: #{tpu_custom_call.1} parent=15 // pred_check
          %p154 = pneg %p67
        $region18: #{tpu_custom_call.1} parent=15 // pred_check_branch
          %156 = sbr.rel (%p154) target = $region20
        $region19: #{tpu_custom_call.1} parent=15 // pred_region
          %s157 = sand.u32 %s57, 1
          %s158 = scalar_lea.sflag [#allocation3], %s157
          %s159 = sand.u32 %s57, 1
          %s160 = smul.addr %s159, 8
          %s161 = scalar_lea.vmem [#allocation2], %s160
          %s162 = sadd.s32 %s25, %s26
          %164 = vsyncadd %s158, 0
          %s165 = smul.addr %s24, 4
          %s166 = sadd.s32 %s162, %s165
          %s167 = smul.addr %s166, 8
          %s168 = scalar_lea.hbm %s0, %s167
          %s170 = sshll.u32 %s168, 4
          %s171 = int_to_ptr.hbm [resolvable:$true] %s170
          %s172 = sshll.u32 %s161, 4
          %s173 = int_to_ptr.vmem [resolvable:$true] %s172
          %175 = dma.hbm_to_vmem [thread:$0]  %s171, 128, %s173, %s158
        $region20: #{tpu_custom_call.1} parent=15 // pred_fallthru
          _
        // Predicated region
        $region21: #{tpu_custom_call.1} parent=15 // pred_check
          %p176 = pneg %p101
        $region22: #{tpu_custom_call.1} parent=15 // pred_check_branch
          %178 = sbr.rel (%p176) target = $region24
        $region23: #{tpu_custom_call.1} parent=15 // pred_region
          %s179 = sand.u32 %s91, 1
          %s180 = scalar_lea.sflag [#allocation6], %s179
          %s181 = sand.u32 %s91, 1
          %s182 = smul.addr %s181, 8
          %s183 = scalar_lea.vmem [#allocation5], %s182
          %s184 = sadd.s32 %s27, 1
          %s185 = sadd.s32 %s25, %s26
          %187 = vsyncadd %s180, 0
          %s188 = sadd.s32 %s185, %s184
          %s189 = smul.addr %s24, 4
          %s190 = sadd.s32 %s188, %s189
          %s191 = smul.addr %s190, 8
          %s192 = scalar_lea.hbm %s1, %s191
          %s194 = sshll.u32 %s192, 4
          %s195 = int_to_ptr.hbm [resolvable:$true] %s194
          %s196 = sshll.u32 %s183, 4
          %s197 = int_to_ptr.vmem [resolvable:$true] %s196
          %199 = dma.hbm_to_vmem [thread:$0]  %s195, 128, %s197, %s180
        $region24: #{tpu_custom_call.1} parent=15 // pred_fallthru
          _
      $region16: #{tpu_custom_call.1} parent=5 // pred_fallthru
        _
      %p200 = scmp.le.s32.totalorder 1, %s17
      %p201 = scmp.lt.s32.totalorder %s17, 5
      %p202 = pnand %p200, %p201
      %p203 = pneg %p202
      // Predicated region
      $region25: #{tpu_custom_call.1} parent=5 // pred_check
        _
      $region26: #{tpu_custom_call.1} parent=5 // pred_check_branch
        %205 = sbr.rel (%p202) target = $region28
      $region27: #{tpu_custom_call.1} parent=5 // pred_region
        %s206 = ssub.s32 %s17, 1
        %s207 = sand.u32 %s60, 1
        %s208 = scalar_lea.sflag [#allocation3], %s207
        %s209 = sand.u32 %s60, 1
        %s210 = smul.addr %s209, 8
        %s211 = scalar_lea.vmem [#allocation2], %s210
        // Predicated region
        $region29: #{tpu_custom_call.1} parent=27 // pred_check
          %p212 = pneg %p73
        $region30: #{tpu_custom_call.1} parent=27 // pred_check_branch
          %214 = sbr.rel (%p212) target = $region32
        $region31: #{tpu_custom_call.1} parent=27 // pred_region
          %216 = dma.done %s208, 128
        $region32: #{tpu_custom_call.1} parent=27 // pred_fallthru
          _
        %s217 = sand.u32 %s94, 1
        %s218 = scalar_lea.sflag [#allocation6], %s217
        %s219 = sand.u32 %s94, 1
        %s220 = smul.addr %s219, 8
        %s221 = scalar_lea.vmem [#allocation5], %s220
        // Predicated region
        $region33: #{tpu_custom_call.1} parent=27 // pred_check
          %p222 = pneg %p107
        $region34: #{tpu_custom_call.1} parent=27 // pred_check_branch
          %224 = sbr.rel (%p222) target = $region36
        $region35: #{tpu_custom_call.1} parent=27 // pred_region
          %226 = dma.done %s218, 128
        $region36: #{tpu_custom_call.1} parent=27 // pred_fallthru
          _
        %s227 = sand.u32 %s60, 1
        %s228 = scalar_lea.sflag [#allocation3], %s227
        %s229 = sand.u32 %s60, 1
        %s230 = smul.addr %s229, 8
        %s231 = scalar_lea.vmem [#allocation2], %s230
        %p232 = pneg %p73
        %p233 = pneg %p70
        %s234 = sand.u32 %s94, 1
        %s235 = scalar_lea.sflag [#allocation6], %s234
        %s236 = sand.u32 %s94, 1
        %s237 = smul.addr %s236, 8
        %s238 = scalar_lea.vmem [#allocation5], %s237
        %p239 = pneg %p107
        %p240 = pneg %p104
        %p241 = pneg %p135
        %p242 = pneg %p132
        %s243 = sand.u32 %s122, 1
        %s244 = scalar_lea.sflag [#allocation4], %s243
        %s245 = sand.u32 %s122, 1
        %s246 = smul.addr %s245, 8
        %s247 = scalar_lea.vmem [#allocation7], %s246
        %s248 = sadd.s32 %s29, %s30
        %s249 = sadd.s32 %s31, 1
        %s250 = sadd.s32 %s29, %s30
        %p251 = scmp.eq.s32.totalorder %s30, 0
        %p252 = scmp.eq.s32.totalorder %s31, 0
        %p253 = pnand %p251, %p252
        %p254 = pneg %p253
        // Predicated region
        $region37: #{tpu_custom_call.1} parent=27 // pred_check
          _
        $region38: #{tpu_custom_call.1} parent=27 // pred_check_branch
          %256 = sbr.rel (%p253) target = $region40
        $region39: #{tpu_custom_call.1} parent=27 // pred_region
          %257 = vst [vmem:[%s247] sm:$0xff] 0.0
        $region40: #{tpu_custom_call.1} parent=27 // pred_fallthru
          _
        %v258 = vld [vmem:[%s211] sm:$0xff]
        %v259 = vld [vmem:[%s221] sm:$0xff]
        %v260 = vmul.f32 %v258, %v258
        %vm261 = vcmask 261120
        %v262 = vsel %vm261, %v260, 0.0
        %263 = vadd.xlane.f32.xlu0 %v262
        %v264 = vpop.xlane.xlu0 %263
        %v265 = vmul.f32 %v259, %v259
        %v266 = vsel %vm261, %v265, 0.0
        %267 = vadd.xlane.f32.xlu0 %v266
        %v268 = vpop.xlane.xlu0 %267
        %v269 = vmul.f32 %v259, %v258
        %v270 = vsel %vm261, %v269, 0.0
        %271 = vadd.xlane.f32.xlu0 %v270
        %v272 = vpop.xlane.xlu0 %271
        %v273 = vmax.f32 %v264, 1e-16
        %v274 = vrsqrt.pop %v273
        %v275 = vmul.f32 %v274, %v273
        %v276 = vmul.f32 %v275, %v274
        %v277 = vmul.f32 0.5, %v276
        %v278 = vsub.f32 1.5, %v277
        %v279 = vmul.f32 %v274, %v278
        %vm280 = vweird.f32 %v273
        %vm281 = vweird.f32 %v274
        %vm282 = vmor %vm280, %vm281
        %v283 = vsel %vm282, %v274, %v279
        %v284 = vmul.f32 %v272, %v283
        %v285 = vmax.f32 %v268, 1e-16
        %v286 = vrsqrt.pop %v285
        %v287 = vmul.f32 %v286, %v285
        %v288 = vmul.f32 %v287, %v286
        %v289 = vmul.f32 0.5, %v288
        %v290 = vsub.f32 1.5, %v289
        %v291 = vmul.f32 %v286, %v290
        %vm292 = vweird.f32 %v285
        %vm293 = vweird.f32 %v286
        %vm294 = vmor %vm292, %vm293
        %v295 = vsel %vm294, %v286, %v291
        %v296 = vmul.f32 %v284, %v295
        %v297 = vsub.f32 1.0, %v296
        %v298 = vld [vmem:[%s247] sm:$0xff]
        %vm299 = vcmask 7168
        %v300 = vsel %vm299, %v297, 0.0
        %301 = vadd.xlane.f32.xlu0 %v300
        %v302 = vpop.xlane.xlu0 %301
        %v303 = vrot.slane %v302, 4
        %v304 = vadd.f32 %v302, %v303
        %v305 = vrot.slane %v304, 2
        %v306 = vadd.f32 %v304, %v305
        %v307 = vrot.slane %v306, 1
        %v308 = vadd.f32 %v306, %v307
        %s309 = vtos %v308
        %v310 = vstv %s309
        %v311 = vadd.f32 %v298, %v310
        %312 = vst [vmem:[%s247] sm:$0xff] %v311
        %s313 = sand.u32 %s122, 1
        %s314 = scalar_lea.sflag [#allocation4], %s313
        %s315 = sand.u32 %s122, 1
        %s316 = smul.addr %s315, 8
        %s317 = scalar_lea.vmem [#allocation7], %s316
        // Predicated region
        $region41: #{tpu_custom_call.1} parent=27 // pred_check
          %p318 = pneg %p132
        $region42: #{tpu_custom_call.1} parent=27 // pred_check_branch
          %320 = sbr.rel (%p318) target = $region44
        $region43: #{tpu_custom_call.1} parent=27 // pred_region
          %322 = vsyncadd %s314, 0
          %s323 = sadd.s32 %s29, %s28
          %s324 = smul.addr %s323, 8
          %s325 = scalar_lea.hbm %s2, %s324
          %s327 = sshll.u32 %s317, 4
          %s328 = int_to_ptr.vmem [resolvable:$true] %s327
          %s329 = sshll.u32 %s325, 4
          %s330 = int_to_ptr.hbm [resolvable:$true] %s329
          %332 = dma.vmem_to_hbm [thread:$0]  %s328, 128, %s330, %s314
        $region44: #{tpu_custom_call.1} parent=27 // pred_fallthru
          _
      $region28: #{tpu_custom_call.1} parent=5 // pred_fallthru
        _
      %p333 = scmp.le.s32.totalorder 2, %s17
      // Predicated region
      $region45: #{tpu_custom_call.1} parent=5 // pred_check
        %p334 = pneg %p333
      $region46: #{tpu_custom_call.1} parent=5 // pred_check_branch
        %336 = sbr.rel (%p334) target = $region48
      $region47: #{tpu_custom_call.1} parent=5 // pred_region
        %s337 = ssub.s32 %s17, 2
        // Predicated region
        $region49: #{tpu_custom_call.1} parent=47 // pred_check
          %p338 = pneg %p138
        $region50: #{tpu_custom_call.1} parent=47 // pred_check_branch
          %340 = sbr.rel (%p338) target = $region52
        $region51: #{tpu_custom_call.1} parent=47 // pred_region
          %s341 = sand.u32 %s123, 1
          %s342 = scalar_lea.sflag [#allocation4], %s341
          %s343 = sand.u32 %s123, 1
          %s344 = smul.addr %s343, 8
          %s345 = scalar_lea.vmem [#allocation7], %s344
          %347 = dma.done %s342, 128
        $region52: #{tpu_custom_call.1} parent=47 // pred_fallthru
          _
      $region48: #{tpu_custom_call.1} parent=5 // pred_fallthru
        _
    $region6: #{tpu_custom_call.1} parent=1 // loop_footer
      %s21 = sadd.s32 1, %s17
    $region7: #{tpu_custom_call.1} parent=1 // loop_footer_branch
      %16 = sbr.rel target = $region3
    $region8: #{tpu_custom_call.1} parent=1 // loop_exit
      _
    %348 = vsyncpa [#allocation3], 1
    %s349 = scalar_lea.sflag [#allocation3], 1
    %350 = vsyncpa %s349, 1
    %351 = vsyncpa [#allocation6], 1
    %s352 = scalar_lea.sflag [#allocation6], 1
    %353 = vsyncpa %s352, 1
    %354 = vsyncpa [#allocation4], 1
    %s355 = scalar_lea.sflag [#allocation4], 1
    %356 = vsyncpa %s355, 1

</llo_original>
